<compile_context>
chip_gen: v6e
topology: v6e:2x2x1
jax: 0.10.0
libtpu: 0.0.40
codegen_flags: <defaults>
</compile_context>

<pallas_src>
import math
from functools import reduce

import jax
import jax.numpy as jnp
from jax.experimental import pallas as pl
from jax.experimental.pallas import tpu as pltpu


def _packed_linear_kernel(x_ref, w_ref, b_ref, o_ref):
    # x_ref: (tb, gc*I), w_ref: (1, gc*I, gc*O), b_ref: (1, 1, gc*O), o_ref: (tb, gc*O)
    acc = jnp.dot(x_ref[...], w_ref[0], preferred_element_type=jnp.float32)
    o_ref[...] = (acc + b_ref[0].astype(jnp.float32)).astype(o_ref.dtype)


def _vmem_capacity_bytes():
    try:
        info = pltpu.get_tpu_info()
        cap = getattr(info, "vmem_capacity_bytes", None)
        if cap:
            return int(cap)
    except Exception:
        pass
    return 64 << 20  # conservative default (v7x physical VMEM)


def _vmem_budgets():
    cap = _vmem_capacity_bytes()
    # 96 MiB limit on 128-MiB parts (v5e/v6e), 48 MiB on 64-MiB v7x.
    vmem_limit = min(100 << 20, (cap * 3) // 4)
    tile_budget = (vmem_limit * 7) // 10  # working-set budget for the block set
    return vmem_limit, tile_budget


def _choose_channel_group(C, I, O, itemsize, weight_budget):
    """Largest divisor gc of C that (a) keeps blocks lane-legal
    (gc*I % 128 == 0 and gc*O % 128 == 0, or gc == C) and (b) whose
    double-buffered block-diagonal group weight fits `weight_budget`."""
    divisors = [d for d in range(1, C + 1) if C % d == 0]
    valid = [d for d in divisors if d == C or (d * I % 128 == 0 and d * O % 128 == 0)]
    fitting = [d for d in valid if 2 * (d * I) * (d * O) * itemsize <= weight_budget]
    if fitting:
        return max(fitting)
    # Nothing fits the budget: smallest legal group (correctness over peak perf).
    return min(valid)


def _choose_batch_tile(B, gc, G, I, O, itemsize, tile_budget, w_block_bytes):
    avail = max(tile_budget - w_block_bytes, tile_budget // 4)
    per_row = 2 * gc * (I + O) * itemsize  # double-buffered x + out bytes per batch row
    tb = max(avail // per_row, 1)
    tb = min(tb, 2048, B)
    if tb < B:
        tb = max((tb // 8) * 8, min(B, 8))  # multiple of 8 (or full B when B < 8)
    # Keep >= 2 grid steps when possible so a v7x megacore can use both TCs.
    if G == 1 and tb >= B and B >= 16:
        tb = (-(-((B + 1) // 2) // 8)) * 8
    return int(tb)


def prepare_params(weights, bias, param_dtype=None):
    """One-time parameter layout prep (hoisted out of the forward pass).

    weights: (C, O, I) -> block-diagonal (C//gc, gc*I, gc*O)
    bias:    (C, O)    -> (C//gc, 1, gc*O)
    Optionally cast params to `param_dtype` (e.g. jnp.bfloat16) to halve HBM
    traffic on this memory-bound layer; kernel accumulation stays f32.
    """
    C, O, I = weights.shape
    assert bias.shape == (C, O)
    if param_dtype is not None:
        weights = weights.astype(param_dtype)
        bias = bias.astype(param_dtype)
    itemsize = jnp.dtype(weights.dtype).itemsize
    _, tile_budget = _vmem_budgets()
    gc = _choose_channel_group(C, I, O, itemsize, weight_budget=tile_budget // 2)
    G = C // gc

    w_t = jnp.transpose(weights, (0, 2, 1)).reshape(G, gc, I, O)  # (G, gc, I, O)
    eye = jnp.eye(gc, dtype=weights.dtype)
    # Block-diagonal within each group: (G, gc, I, gc, O) -> (G, gc*I, gc*O)
    w_bd = jnp.einsum("gaio,ab->gaibo", w_t, eye).reshape(G, gc * I, gc * O)
    b_g = bias.reshape(G, 1, gc * O)
    meta = dict(channels=C, in_features=I, out_features=O, group=gc)
    return w_bd, b_g, meta


def linear_with_channel(x, w_bd, b_g, meta):
    """Pallas implementation of LinearWithChannel.forward.

    Args:
      x:    (..., C, I)
      w_bd: (C//gc, gc*I, gc*O)   (from prepare_params)
      b_g:  (C//gc, 1, gc*O)      (from prepare_params)
      meta: dict with channels / in_features / out_features / group
    Returns:
      (..., C, O)
    """
    C, I, O, gc = meta["channels"], meta["in_features"], meta["out_features"], meta["group"]
    G = C // gc
    assert x.ndim >= 2, "Requires (..., channel, features) shape."
    assert x.shape[-2] == C and x.shape[-1] == I

    lead_shape = x.shape[:-2]
    B = int(reduce(lambda a, b: a * b, lead_shape, 1))
    x2 = x.reshape(B, C * I)  # contiguous reshape: no HBM transpose

    itemsize = jnp.dtype(x.dtype).itemsize
    vmem_limit, tile_budget = _vmem_budgets()
    w_block_bytes = 2 * (gc * I) * (gc * O) * jnp.dtype(w_bd.dtype).itemsize
    tb = _choose_batch_tile(B, gc, G, I, O, itemsize, tile_budget, w_block_bytes)
    grid = (G, pl.cdiv(B, tb))

    out2 = pl.pallas_call(
        _packed_linear_kernel,
        out_shape=jax.ShapeDtypeStruct((B, C * O), x.dtype),
        grid_spec=pltpu.PrefetchScalarGridSpec(
            num_scalar_prefetch=0,
            grid=grid,
            in_specs=[
                # Activations: fresh (tb, gc*I) block every (group, batch-tile).
                pl.BlockSpec((tb, gc * I), lambda cg, bt: (bt, cg)),
                # Block-diag group weight / bias: depend only on the OUTER axis,
                # so they stay resident in VMEM across all inner batch tiles.
                pl.BlockSpec((1, gc * I, gc * O), lambda cg, bt: (cg, 0, 0)),
                pl.BlockSpec((1, 1, gc * O), lambda cg, bt: (cg, 0, 0)),
            ],
            out_specs=pl.BlockSpec((tb, gc * O), lambda cg, bt: (bt, cg)),
        ),
        compiler_params=pltpu.CompilerParams(
            dimension_semantics=("parallel", "parallel"),
            vmem_limit_bytes=int(vmem_limit),
        ),
    )(x2, w_bd, b_g)

    return out2.reshape(*lead_shape, C, O)


def init_params(key, channels, in_features, out_features, dtype=jnp.float32):
    """Deterministic init mirroring the PyTorch module (kaiming_uniform a=sqrt(5)
    on weights, uniform(-bound, bound) on bias; fan_in = out_features*in_features
    because of the (C, O, I) parameter shape)."""
    kw, kb = jax.random.split(key)
    fan_in_w = out_features * in_features
    gain = math.sqrt(2.0 / (1.0 + 5.0))
    w_bound = gain * math.sqrt(3.0 / fan_in_w)
    weights = jax.random.uniform(
        kw, (channels, out_features, in_features), dtype, -w_bound, w_bound
    )
    b_bound = 1.0 / math.sqrt(fan_in_w) if fan_in_w > 0 else 0.0
    bias = jax.random.uniform(kb, (channels, out_features), dtype, -b_bound, b_bound)
    return weights, bias


if __name__ == "__main__":
    key = jax.random.PRNGKey(0)
    k_x, k_p = jax.random.split(key)

    batch = 2
    channels = 4
    in_features = 32
    out_features = 16

    x = jax.random.normal(k_x, (batch, channels, in_features), jnp.float32)
    weights, bias = init_params(k_p, channels, in_features, out_features)

    # One-time parameter layout prep (not part of the per-call forward cost).
    w_bd, b_g, meta = prepare_params(weights, bias)

    out = linear_with_channel(x, w_bd, b_g, meta)
    out = jax.block_until_ready(out)

    # Reference: same math as torch.matmul(W, x.unsqueeze(-1)).squeeze(-1) + b
    ref = jnp.einsum("coi,bci->bco", weights, x) + bias[None, :, :]
    assert out.shape == (batch, channels, out_features)
    assert jnp.allclose(out, ref, atol=1e-5, rtol=1e-5)

    print("KERNEL_OK")
</pallas_src>

<mosaic_0001>
module attributes {stable_mosaic.version = 11 : i64} {
  func.func @_packed_linear_kernel(%arg0: i32, %arg1: i32, %arg2: memref<2x128xf32, #tpu.memory_space<vmem>>, %arg3: memref<1x128x64xf32, #tpu.memory_space<vmem>>, %arg4: memref<1x1x64xf32, #tpu.memory_space<vmem>>, %arg5: memref<2x64xf32, #tpu.memory_space<vmem>>) attributes {dimension_semantics = [#tpu.dimension_semantics<parallel>, #tpu.dimension_semantics<parallel>], iteration_bounds = array<i64: 1, 1>, scalar_prefetch = 0 : i64, scratch_operands = 0 : i64, tpu.core_type = #tpu.core_type<tc>, window_params = [{transform_indices = @transform_0, window_bounds = array<i64: 2, 128>}, {transform_indices = @transform_1, window_bounds = array<i64: 1, 128, 64>}, {transform_indices = @transform_2, window_bounds = array<i64: 1, 1, 64>}, {transform_indices = @transform_3, window_bounds = array<i64: 2, 64>}]} {
    %c0 = arith.constant 0 : index
    %c0_0 = arith.constant 0 : index
    %0 = vector.load %arg2[%c0, %c0_0] : memref<2x128xf32, #tpu.memory_space<vmem>>, vector<2x128xf32>
    %c0_1 = arith.constant 0 : index
    %c0_2 = arith.constant 0 : index
    %c0_3 = arith.constant 0 : index
    %1 = vector.load %arg3[%c0_1, %c0_2, %c0_3] : memref<1x128x64xf32, #tpu.memory_space<vmem>>, vector<1x128x64xf32>
    %2 = vector.shape_cast %1 : vector<1x128x64xf32> to vector<128x64xf32>
    %cst = arith.constant dense<0.000000e+00> : vector<2x64xf32>
    %3 = tpu.matmul %0, %2, %cst {dimension_numbers = #tpu.dot_dimension_numbers<[1], [0], [0], [1], [0, 0, 1, 1], [], []>} : vector<2x128xf32>, vector<128x64xf32>, vector<2x64xf32> -> vector<2x64xf32>
    %c0_4 = arith.constant 0 : index
    %c0_5 = arith.constant 0 : index
    %c0_6 = arith.constant 0 : index
    %4 = vector.load %arg4[%c0_4, %c0_5, %c0_6] : memref<1x1x64xf32, #tpu.memory_space<vmem>>, vector<1x1x64xf32>
    %5 = vector.shape_cast %4 : vector<1x1x64xf32> to vector<1x64xf32>
    %6 = vector.broadcast %5 : vector<1x64xf32> to vector<2x64xf32>
    %7 = arith.addf %3, %6 : vector<2x64xf32>
    %c0_7 = arith.constant 0 : index
    %c0_8 = arith.constant 0 : index
    %8 = vector.load %arg5[%c0_7, %c0_8] : memref<2x64xf32, #tpu.memory_space<vmem>>, vector<2x64xf32>
    tpu.vector_store %arg5[%c0_7, %c0_8], %7 {strides = array<i32>} : memref<2x64xf32, #tpu.memory_space<vmem>>, vector<2x64xf32>,
    return
  }
  func.func @transform_0(%arg0: i32, %arg1: i32) -> (i32, i32) {
    %c0_i32 = arith.constant 0 : i32
    return %arg1, %arg0 : i32, i32
  }
  func.func @transform_1(%arg0: i32, %arg1: i32) -> (i32, i32, i32) {
    %c0_i32 = arith.constant 0 : i32
    %c0_i32_0 = arith.constant 0 : i32
    %c0_i32_1 = arith.constant 0 : i32
    return %arg0, %c0_i32, %c0_i32_0 : i32, i32, i32
  }
  func.func @transform_2(%arg0: i32, %arg1: i32) -> (i32, i32, i32) {
    %c0_i32 = arith.constant 0 : i32
    %c0_i32_0 = arith.constant 0 : i32
    %c0_i32_1 = arith.constant 0 : i32
    return %arg0, %c0_i32, %c0_i32_0 : i32, i32, i32
  }
  func.func @transform_3(%arg0: i32, %arg1: i32) -> (i32, i32) {
    %c0_i32 = arith.constant 0 : i32
    return %arg1, %arg0 : i32, i32
  }
}

</mosaic_0001>

<llo_original>
// kernel: tpu_custom_call.1
$region0: #{tpu_custom_call.1}
  #allocation0 [shape = 'u32[]', space=smem, size = 0x4, offset = 0x4, fixed_abs, tag = 'smem constant byte address 0x4 - core index']
  #allocation1 [shape = 'u32[144,128]{1,0:T(1,128)}', space=vmem, size = 0x12000, scoped, tag = 'internal scratch']
  %s0 = inlined_call_operand.vmem [shape: f32[2,128], index: 0, kind: input, shape index: {}]
  %s1 = inlined_call_operand.vmem [shape: f32[1,128,64], index: 1, kind: input, shape index: {}]
  %s2 = inlined_call_operand.vmem [shape: f32[1,1,64], index: 2, kind: input, shape index: {}]
  %s3 = inlined_call_operand.hbm [shape: f32[2,64], index: 3, kind: output, shape index: {}]
  %s4 = sld [smem:[#allocation0]]
  $region22: #{tpu_custom_call.1} parent=0
    _
  %s6 = ssub.s32 1, %s4
  %s7 = scalar_select 0, %s6, %s4
  $region1: #{tpu_custom_call.1} parent=0
    #allocation2 [shape = 'u8[1024]{0}', space=vmem, size = 0x400, scoped, tag = 'output window, operand 0, single buffered']
    #allocation3 [shape = 's32[1]{0}', space=sflag, size = 0x4, scoped, tag = 'scoped memory for tpu_custom_call.1']
    %8 = vsyncpa [#allocation3], 0
    // Predicated region
    $region2: #{tpu_custom_call.1} parent=1 // pred_check
      _
    $region3: #{tpu_custom_call.1} parent=1 // pred_check_branch
      %10 = sbr.rel (0) target = $region5
    $region4: #{tpu_custom_call.1} parent=1 // pred_region
      _
    $region5: #{tpu_custom_call.1} parent=1 // pred_fallthru
      _
    // Predicated region
    $region6: #{tpu_custom_call.1} parent=1 // pred_check
      _
    $region7: #{tpu_custom_call.1} parent=1 // pred_check_branch
      %12 = sbr.rel (0) target = $region9
    $region8: #{tpu_custom_call.1} parent=1 // pred_region
      _
    $region9: #{tpu_custom_call.1} parent=1 // pred_fallthru
      _
    // Predicated region
    $region10: #{tpu_custom_call.1} parent=1 // pred_check
      _
    $region11: #{tpu_custom_call.1} parent=1 // pred_check_branch
      %14 = sbr.rel (0) target = $region13
    $region12: #{tpu_custom_call.1} parent=1 // pred_region
      _
    $region13: #{tpu_custom_call.1} parent=1 // pred_fallthru
      _
    %v15 = vld [vmem:[%s0] sm:$0x3]
    %v16 = vld [vmem:[%s1] sm:$0xff]
    %v17 = vld [vmem:[%s1 + $0x8] sm:$0xff]
    %v18 = vld [vmem:[%s1 + $0x10] sm:$0xff]
    %v19 = vld [vmem:[%s1 + $0x18] sm:$0xff]
    %v20 = vld [vmem:[%s1 + $0x20] sm:$0xff]
    %v21 = vld [vmem:[%s1 + $0x28] sm:$0xff]
    %v22 = vld [vmem:[%s1 + $0x30] sm:$0xff]
    %v23 = vld [vmem:[%s1 + $0x38] sm:$0xff]
    %v24 = vld [vmem:[%s1 + $0x40] sm:$0xff]
    %v25 = vld [vmem:[%s1 + $0x48] sm:$0xff]
    %v26 = vld [vmem:[%s1 + $0x50] sm:$0xff]
    %v27 = vld [vmem:[%s1 + $0x58] sm:$0xff]
    %v28 = vld [vmem:[%s1 + $0x60] sm:$0xff]
    %v29 = vld [vmem:[%s1 + $0x68] sm:$0xff]
    %v30 = vld [vmem:[%s1 + $0x70] sm:$0xff]
    %v31 = vld [vmem:[%s1 + $0x78] sm:$0xff]
    %v32 = vld [vmem:[%s2] sm:$0x1]
    %v34 = vlaneseq
    %v35 = vshrl.u32 %v34, 7
    %v36 = vsub.s32 0, %v35
    %v37 = vrot.slane %v32, %v36
    %39 = vmatprep.subr.mxu0 0.0
    %40 = vmatpush1.msra.mxu0 %v31
    %41 = vmatprep.subr.mxu0 0.0
    %42 = vmatpush1.msra.mxu0 %v30
    %43 = vmatprep.subr.mxu0 0.0
    %44 = vmatpush1.msra.mxu0 %v29
    %45 = vmatprep.subr.mxu0 0.0
    %46 = vmatpush1.msra.mxu0 %v28
    %47 = vmatprep.subr.mxu0 0.0
    %48 = vmatpush1.msra.mxu0 %v27
    %49 = vmatprep.subr.mxu0 0.0
    %50 = vmatpush1.msra.mxu0 %v26
    %51 = vmatprep.subr.mxu0 0.0
    %52 = vmatpush1.msra.mxu0 %v25
    %53 = vmatprep.subr.mxu0 0.0
    %54 = vmatpush1.msra.mxu0 %v24
    %55 = vmatprep.subr.mxu0 0.0
    %56 = vmatpush1.msra.mxu0 %v23
    %57 = vmatprep.subr.mxu0 0.0
    %58 = vmatpush1.msra.mxu0 %v22
    %59 = vmatprep.subr.mxu0 0.0
    %60 = vmatpush1.msra.mxu0 %v21
    %61 = vmatprep.subr.mxu0 0.0
    %62 = vmatpush1.msra.mxu0 %v20
    %63 = vmatprep.subr.mxu0 0.0
    %64 = vmatpush1.msra.mxu0 %v19
    %65 = vmatprep.subr.mxu0 0.0
    %66 = vmatpush1.msra.mxu0 %v18
    %67 = vmatprep.subr.mxu0 0.0
    %68 = vmatpush1.msra.mxu0 %v17
    %69 = vmatprep.subr.mxu0 0.0
    %70 = vmatpush1.msra.mxu0 %v16
    %71 = vmatprep.subr.mxu0 0.0
    %72 = vmatpush2.msra.mxu0 0.0
    %73 = vmatprep.subr.mxu0 0.0
    %74 = vmatpush2.msra.mxu0 0.0
    %75 = vmatprep.subr.mxu0 0.0
    %76 = vmatpush2.msra.mxu0 0.0
    %77 = vmatprep.subr.mxu0 0.0
    %78 = vmatpush2.msra.mxu0 0.0
    %79 = vmatprep.subr.mxu0 0.0
    %80 = vmatpush2.msra.mxu0 0.0
    %81 = vmatprep.subr.mxu0 0.0
    %82 = vmatpush2.msra.mxu0 0.0
    %83 = vmatprep.subr.mxu0 0.0
    %84 = vmatpush2.msra.mxu0 0.0
    %85 = vmatprep.subr.mxu0 0.0
    %86 = vmatpush2.msra.mxu0 0.0
    %87 = vmatprep.subr.mxu0 0.0
    %88 = vmatpush2.msra.mxu0 0.0
    %89 = vmatprep.subr.mxu0 0.0
    %90 = vmatpush2.msra.mxu0 0.0
    %91 = vmatprep.subr.mxu0 0.0
    %92 = vmatpush2.msra.mxu0 0.0
    %93 = vmatprep.subr.mxu0 0.0
    %94 = vmatpush2.msra.mxu0 0.0
    %95 = vmatprep.subr.mxu0 0.0
    %96 = vmatpush2.msra.mxu0 0.0
    %97 = vmatprep.subr.mxu0 0.0
    %98 = vmatpush2.msra.mxu0 0.0
    %99 = vmatprep.subr.mxu0 0.0
    %100 = vmatpush2.msra.mxu0 0.0
    %101 = vmatprep.subr.mxu0 0.0
    %102 = vmatpush2.msra.mxu0 0.0
    %103 = vmatprep.mubr.f32.mxu0 0.0
    %104 = vmatmul.mubr.f32.gmra.mxu0 %v15
    %v105 = vpop.f32.mrf.mxu0
    %v106 = vadd.f32 %v37, %v105
    %v107 = vpop.f32.mrf.mxu0
    %108 = vdwg.mxu0
    %vm109 = vcmask 517120
    %110 = vst.msk [vmem:[#allocation2] sm:$0x3] %vm109, %v106
    // Predicated region
    $region14: #{tpu_custom_call.1} parent=1 // pred_check
      _
    $region15: #{tpu_custom_call.1} parent=1 // pred_check_branch
      %112 = sbr.rel (0) target = $region17
    $region16: #{tpu_custom_call.1} parent=1 // pred_region
      %s114 = ssub.s32 32, 32
      %115 = vsyncadd [#allocation3], %s114
      %s117 = sshll.u32 [#allocation2], 4
      %s118 = int_to_ptr.vmem [resolvable:$true] %s117
      %120 = dma.vmem_to_hbm [thread:$0]  %s118, 32, %s3, [#allocation3]
    $region17: #{tpu_custom_call.1} parent=1 // pred_fallthru
      _
    // Predicated region
    $region18: #{tpu_custom_call.1} parent=1 // pred_check
      _
    $region19: #{tpu_custom_call.1} parent=1 // pred_check_branch
      %122 = sbr.rel (0) target = $region21
    $region20: #{tpu_custom_call.1} parent=1 // pred_region
      %123 = dma.done [#allocation3], 32
    $region21: #{tpu_custom_call.1} parent=1 // pred_fallthru
      _
    %124 = vsyncpa [#allocation3], 1

</llo_original>
